<compile_context>
chip_gen: v7x
topology: tpu7x:2x2x1
jax: 0.10.0
libtpu: 0.0.40
codegen_flags: <defaults>
</compile_context>

<pallas_src>
import functools

import jax
import jax.numpy as jnp
from jax.experimental import pallas as pl
from jax.experimental.pallas import tpu as pltpu


def _pad128(n):
    return ((n + 127) // 128) * 128


def _pad8(n):
    return ((n + 7) // 8) * 8


def _pad2d(x, rows, cols):
    r, c = x.shape
    return jnp.pad(x, ((0, rows - r), (0, cols - c)))


# ---------------------------------------------------------------------------
# Fused Pallas kernel: the WHOLE SeqDecoder in a single pallas_call.
# refs layout:
#   t_seq, emb,
#   per decoder layer: [Wt_i, bt_i]*n_t, Wf0_t, Wf0_e, bf0, [Wf_i, bf_i]*(n_fc-1),
#   out
# ---------------------------------------------------------------------------
def _seq_decoder_kernel(n_layers, n_t, n_fc, *refs):
    t_seq = refs[0][...]
    x = refs[1][...]
    out_ref = refs[-1]
    params = refs[2:-1]
    per_layer = 2 * n_t + 3 + 2 * (n_fc - 1)

    # ---- hoisted t-branches: depend only on t_seq, independent of the running emb ----
    t_list = []
    for l in range(n_layers):
        base = l * per_layer
        t = t_seq
        for i in range(n_t):
            w = params[base + 2 * i][...]
            b = params[base + 2 * i + 1][...]
            t = jnp.maximum(
                jnp.dot(t, w, preferred_element_type=jnp.float32) + b, 0.0)
        t_list.append(t)

    # ---- fc chains: running embedding stays on-chip across decoder layers ----
    for l in range(n_layers):
        base = l * per_layer + 2 * n_t
        w_t = params[base][...]      # rows of Wf0 multiplying the t-branch output
        w_e = params[base + 1][...]  # rows of Wf0 multiplying the running embedding
        b0 = params[base + 2][...]
        h = (jnp.dot(t_list[l], w_t, preferred_element_type=jnp.float32)
             + jnp.dot(x, w_e, preferred_element_type=jnp.float32)
             + b0)
        h = jnp.maximum(h, 0.0)
        for i in range(n_fc - 1):
            w = params[base + 3 + 2 * i][...]
            b = params[base + 3 + 2 * i + 1][...]
            h = jnp.maximum(
                jnp.dot(h, w, preferred_element_type=jnp.float32) + b, 0.0)
        x = h

    out_ref[...] = x.astype(out_ref.dtype)


# ---------------------------------------------------------------------------
# Wrapper: pad everything to (8-sublane, 128-lane) multiples, fuse all layers
# into one pallas_call, slice the padding off the result.
# ---------------------------------------------------------------------------
def seq_decoder_forward(params, t_seq, input_embedding):
    n_layers = len(params)
    if n_layers == 0:
        return input_embedding
    n_t = len(params[0][0])
    n_fc = len(params[0][1])
    # TODO(synk): fc_layers == 0 (output is the raw concat) is not supported by the
    # concat-free split-matmul formulation; SeqDecoder is normally used with fc_layers>=1.
    assert n_fc >= 1, "fused kernel requires at least one fc layer per SwissArmyLayer"

    B, t_bits = t_seq.shape
    emb_dim = input_embedding.shape[-1]
    Bp = _pad8(B)
    t_out = params[0][0][-1][0].shape[1] if n_t > 0 else t_bits

    inputs = [
        _pad2d(t_seq.astype(jnp.float32), Bp, _pad128(t_bits)),
        _pad2d(input_embedding.astype(jnp.float32), Bp, _pad128(emb_dim)),
    ]
    flops = 0
    cur_emb = emb_dim
    for t_params, fc_params in params:
        hidden = t_out + cur_emb
        # t-branch weights
        for w, b in t_params:
            wp = _pad2d(w, _pad128(w.shape[0]), _pad128(w.shape[1]))
            bp = _pad2d(b, 1, _pad128(b.shape[1]))
            inputs += [wp, bp]
            flops += 2 * Bp * wp.shape[0] * wp.shape[1]
        # first fc layer: split rows so no lane-axis concat is needed in the kernel
        w0, b0 = fc_params[0]
        w0_t = _pad2d(w0[:t_out, :], _pad128(t_out), _pad128(hidden))
        w0_e = _pad2d(w0[t_out:, :], _pad128(cur_emb), _pad128(hidden))
        b0p = _pad2d(b0, 1, _pad128(hidden))
        inputs += [w0_t, w0_e, b0p]
        flops += 2 * Bp * (w0_t.shape[0] + w0_e.shape[0]) * w0_t.shape[1]
        # remaining fc layers
        for w, b in fc_params[1:]:
            wp = _pad2d(w, _pad128(hidden), _pad128(hidden))
            bp = _pad2d(b, 1, _pad128(hidden))
            inputs += [wp, bp]
            flops += 2 * Bp * wp.shape[0] * wp.shape[1]
        cur_emb = hidden

    out_dim = cur_emb
    out_pad = _pad128(out_dim)
    bytes_accessed = int(
        sum(a.size * a.dtype.itemsize for a in inputs) + Bp * out_pad * 4)

    kernel = functools.partial(_seq_decoder_kernel, n_layers, n_t, n_fc)

    # grid=() (default): single invocation, whole (tiny) arrays resident in VMEM,
    # no double-buffered pipeline machinery.
    out = pl.pallas_call(
        kernel,
        out_shape=jax.ShapeDtypeStruct((Bp, out_pad), jnp.float32),
        cost_estimate=pl.CostEstimate(
            flops=flops, transcendentals=0, bytes_accessed=bytes_accessed),
        compiler_params=pltpu.CompilerParams(
            vmem_limit_bytes=32 * 1024 * 1024),
    )(*inputs)
    return out[:B, :out_dim]


# ---------------------------------------------------------------------------
# Parameter init (mirrors torch nn.Linear default: U(-1/sqrt(fan_in), 1/sqrt(fan_in)))
# Weights stored transposed: (in_f, out_f).  Biases stored as (1, out_f).
# ---------------------------------------------------------------------------
def _init_linear(key, fan_in, fan_out):
    kw, kb = jax.random.split(key)
    bound = 1.0 / jnp.sqrt(jnp.float32(fan_in))
    w = jax.random.uniform(
        kw, (fan_in, fan_out), jnp.float32, minval=-bound, maxval=bound)
    b = jax.random.uniform(
        kb, (1, fan_out), jnp.float32, minval=-bound, maxval=bound)
    return w, b


def init_seq_decoder(key, t_seq_bits, t_layer_dim, t_num_layers, fc_layers,
                     decoder_layers, input_embedding_dim):
    params = []
    emb_dim = input_embedding_dim
    t_out_dim = t_layer_dim if t_num_layers > 0 else t_seq_bits
    for _ in range(decoder_layers):
        t_params = []
        in_d = t_seq_bits
        for _ in range(t_num_layers):
            key, sub = jax.random.split(key)
            t_params.append(_init_linear(sub, in_d, t_layer_dim))
            in_d = t_layer_dim
        hidden = t_out_dim + emb_dim
        fc_params = []
        for _ in range(fc_layers):
            key, sub = jax.random.split(key)
            fc_params.append(_init_linear(sub, hidden, hidden))
        params.append((t_params, fc_params))
        emb_dim = emb_dim + t_out_dim
    return params


# Pure-JAX reference (for correctness check only)
def seq_decoder_ref(params, t_seq, input_embedding):
    x = input_embedding
    for t_params, fc_params in params:
        t = t_seq
        for w, b in t_params:
            t = jnp.maximum(t @ w + b, 0.0)
        y = jnp.concatenate([t, x], axis=-1)
        for w, b in fc_params:
            y = jnp.maximum(y @ w + b, 0.0)
        x = y
    return x


if __name__ == "__main__":
    # Small config consistent with SeqDecoder.__init__
    B = 2
    t_seq_bits = 8
    t_layer_dim = 16
    t_num_layers = 2
    fc_layers = 2
    decoder_layers = 2
    input_embedding_dim = 16

    key = jax.random.PRNGKey(0)
    key, kp, kt, ke = jax.random.split(key, 4)

    params = init_seq_decoder(
        kp, t_seq_bits, t_layer_dim, t_num_layers, fc_layers,
        decoder_layers, input_embedding_dim)

    t_seq = jax.random.normal(kt, (B, t_seq_bits), jnp.float32)
    input_embedding = jax.random.normal(ke, (B, input_embedding_dim), jnp.float32)

    fwd = jax.jit(lambda ts, ie: seq_decoder_forward(params, ts, ie))
    out = fwd(t_seq, input_embedding)
    jax.block_until_ready(out)

    ref = seq_decoder_ref(params, t_seq, input_embedding)
    assert out.shape == ref.shape, (out.shape, ref.shape)
    assert jnp.allclose(out, ref, atol=1e-5, rtol=1e-5)

    print("KERNEL_OK")
</pallas_src>

<mosaic_0001>
module attributes {stable_mosaic.version = 11 : i64} {
  func.func @_seq_decoder_kernel(%arg0: memref<8x128xf32, #tpu.memory_space<vmem>>, %arg1: memref<8x128xf32, #tpu.memory_space<vmem>>, %arg2: memref<128x128xf32, #tpu.memory_space<vmem>>, %arg3: memref<1x128xf32, #tpu.memory_space<vmem>>, %arg4: memref<128x128xf32, #tpu.memory_space<vmem>>, %arg5: memref<1x128xf32, #tpu.memory_space<vmem>>, %arg6: memref<128x128xf32, #tpu.memory_space<vmem>>, %arg7: memref<128x128xf32, #tpu.memory_space<vmem>>, %arg8: memref<1x128xf32, #tpu.memory_space<vmem>>, %arg9: memref<128x128xf32, #tpu.memory_space<vmem>>, %arg10: memref<1x128xf32, #tpu.memory_space<vmem>>, %arg11: memref<128x128xf32, #tpu.memory_space<vmem>>, %arg12: memref<1x128xf32, #tpu.memory_space<vmem>>, %arg13: memref<128x128xf32, #tpu.memory_space<vmem>>, %arg14: memref<1x128xf32, #tpu.memory_space<vmem>>, %arg15: memref<128x128xf32, #tpu.memory_space<vmem>>, %arg16: memref<128x128xf32, #tpu.memory_space<vmem>>, %arg17: memref<1x128xf32, #tpu.memory_space<vmem>>, %arg18: memref<128x128xf32, #tpu.memory_space<vmem>>, %arg19: memref<1x128xf32, #tpu.memory_space<vmem>>, %arg20: memref<8x128xf32, #tpu.memory_space<vmem>>) attributes {dimension_semantics = [], scalar_prefetch = 0 : i64, scratch_operands = 0 : i64, tpu.core_type = #tpu.core_type<tc>} {
    %c0 = arith.constant 0 : index
    %c0_0 = arith.constant 0 : index
    %0 = vector.load %arg0[%c0, %c0_0] : memref<8x128xf32, #tpu.memory_space<vmem>>, vector<8x128xf32>
    %c0_1 = arith.constant 0 : index
    %c0_2 = arith.constant 0 : index
    %1 = vector.load %arg1[%c0_1, %c0_2] : memref<8x128xf32, #tpu.memory_space<vmem>>, vector<8x128xf32>
    %c0_3 = arith.constant 0 : index
    %c0_4 = arith.constant 0 : index
    %2 = vector.load %arg2[%c0_3, %c0_4] : memref<128x128xf32, #tpu.memory_space<vmem>>, vector<128x128xf32>
    %c0_5 = arith.constant 0 : index
    %c0_6 = arith.constant 0 : index
    %3 = vector.load %arg3[%c0_5, %c0_6] : memref<1x128xf32, #tpu.memory_space<vmem>>, vector<1x128xf32>
    %cst = arith.constant dense<0.000000e+00> : vector<8x128xf32>
    %4 = tpu.matmul %0, %2, %cst {dimension_numbers = #tpu.dot_dimension_numbers<[1], [0], [0], [1], [0, 0, 1, 1], [], []>} : vector<8x128xf32>, vector<128x128xf32>, vector<8x128xf32> -> vector<8x128xf32>
    %5 = vector.broadcast %3 : vector<1x128xf32> to vector<8x128xf32>
    %6 = arith.addf %4, %5 : vector<8x128xf32>
    %cst_7 = arith.constant 0.000000e+00 : f32
    %7 = vector.broadcast %cst_7 : f32 to vector<8x128xf32>
    %8 = arith.maximumf %6, %7 : vector<8x128xf32>
    %c0_8 = arith.constant 0 : index
    %c0_9 = arith.constant 0 : index
    %9 = vector.load %arg4[%c0_8, %c0_9] : memref<128x128xf32, #tpu.memory_space<vmem>>, vector<128x128xf32>
    %c0_10 = arith.constant 0 : index
    %c0_11 = arith.constant 0 : index
    %10 = vector.load %arg5[%c0_10, %c0_11] : memref<1x128xf32, #tpu.memory_space<vmem>>, vector<1x128xf32>
    %cst_12 = arith.constant dense<0.000000e+00> : vector<8x128xf32>
    %11 = tpu.matmul %8, %9, %cst_12 {dimension_numbers = #tpu.dot_dimension_numbers<[1], [0], [0], [1], [0, 0, 1, 1], [], []>} : vector<8x128xf32>, vector<128x128xf32>, vector<8x128xf32> -> vector<8x128xf32>
    %12 = vector.broadcast %10 : vector<1x128xf32> to vector<8x128xf32>
    %13 = arith.addf %11, %12 : vector<8x128xf32>
    %cst_13 = arith.constant 0.000000e+00 : f32
    %14 = vector.broadcast %cst_13 : f32 to vector<8x128xf32>
    %15 = arith.maximumf %13, %14 : vector<8x128xf32>
    %c0_14 = arith.constant 0 : index
    %c0_15 = arith.constant 0 : index
    %16 = vector.load %arg11[%c0_14, %c0_15] : memref<128x128xf32, #tpu.memory_space<vmem>>, vector<128x128xf32>
    %c0_16 = arith.constant 0 : index
    %c0_17 = arith.constant 0 : index
    %17 = vector.load %arg12[%c0_16, %c0_17] : memref<1x128xf32, #tpu.memory_space<vmem>>, vector<1x128xf32>
    %cst_18 = arith.constant dense<0.000000e+00> : vector<8x128xf32>
    %18 = tpu.matmul %0, %16, %cst_18 {dimension_numbers = #tpu.dot_dimension_numbers<[1], [0], [0], [1], [0, 0, 1, 1], [], []>} : vector<8x128xf32>, vector<128x128xf32>, vector<8x128xf32> -> vector<8x128xf32>
    %19 = vector.broadcast %17 : vector<1x128xf32> to vector<8x128xf32>
    %20 = arith.addf %18, %19 : vector<8x128xf32>
    %cst_19 = arith.constant 0.000000e+00 : f32
    %21 = vector.broadcast %cst_19 : f32 to vector<8x128xf32>
    %22 = arith.maximumf %20, %21 : vector<8x128xf32>
    %c0_20 = arith.constant 0 : index
    %c0_21 = arith.constant 0 : index
    %23 = vector.load %arg13[%c0_20, %c0_21] : memref<128x128xf32, #tpu.memory_space<vmem>>, vector<128x128xf32>
    %c0_22 = arith.constant 0 : index
    %c0_23 = arith.constant 0 : index
    %24 = vector.load %arg14[%c0_22, %c0_23] : memref<1x128xf32, #tpu.memory_space<vmem>>, vector<1x128xf32>
    %cst_24 = arith.constant dense<0.000000e+00> : vector<8x128xf32>
    %25 = tpu.matmul %22, %23, %cst_24 {dimension_numbers = #tpu.dot_dimension_numbers<[1], [0], [0], [1], [0, 0, 1, 1], [], []>} : vector<8x128xf32>, vector<128x128xf32>, vector<8x128xf32> -> vector<8x128xf32>
    %26 = vector.broadcast %24 : vector<1x128xf32> to vector<8x128xf32>
    %27 = arith.addf %25, %26 : vector<8x128xf32>
    %cst_25 = arith.constant 0.000000e+00 : f32
    %28 = vector.broadcast %cst_25 : f32 to vector<8x128xf32>
    %29 = arith.maximumf %27, %28 : vector<8x128xf32>
    %c0_26 = arith.constant 0 : index
    %c0_27 = arith.constant 0 : index
    %30 = vector.load %arg6[%c0_26, %c0_27] : memref<128x128xf32, #tpu.memory_space<vmem>>, vector<128x128xf32>
    %c0_28 = arith.constant 0 : index
    %c0_29 = arith.constant 0 : index
    %31 = vector.load %arg7[%c0_28, %c0_29] : memref<128x128xf32, #tpu.memory_space<vmem>>, vector<128x128xf32>
    %c0_30 = arith.constant 0 : index
    %c0_31 = arith.constant 0 : index
    %32 = vector.load %arg8[%c0_30, %c0_31] : memref<1x128xf32, #tpu.memory_space<vmem>>, vector<1x128xf32>
    %cst_32 = arith.constant dense<0.000000e+00> : vector<8x128xf32>
    %33 = tpu.matmul %15, %30, %cst_32 {dimension_numbers = #tpu.dot_dimension_numbers<[1], [0], [0], [1], [0, 0, 1, 1], [], []>} : vector<8x128xf32>, vector<128x128xf32>, vector<8x128xf32> -> vector<8x128xf32>
    %cst_33 = arith.constant dense<0.000000e+00> : vector<8x128xf32>
    %34 = tpu.matmul %1, %31, %cst_33 {dimension_numbers = #tpu.dot_dimension_numbers<[1], [0], [0], [1], [0, 0, 1, 1], [], []>} : vector<8x128xf32>, vector<128x128xf32>, vector<8x128xf32> -> vector<8x128xf32>
    %35 = arith.addf %33, %34 : vector<8x128xf32>
    %36 = vector.broadcast %32 : vector<1x128xf32> to vector<8x128xf32>
    %37 = arith.addf %35, %36 : vector<8x128xf32>
    %cst_34 = arith.constant 0.000000e+00 : f32
    %38 = vector.broadcast %cst_34 : f32 to vector<8x128xf32>
    %39 = arith.maximumf %37, %38 : vector<8x128xf32>
    %c0_35 = arith.constant 0 : index
    %c0_36 = arith.constant 0 : index
    %40 = vector.load %arg9[%c0_35, %c0_36] : memref<128x128xf32, #tpu.memory_space<vmem>>, vector<128x128xf32>
    %c0_37 = arith.constant 0 : index
    %c0_38 = arith.constant 0 : index
    %41 = vector.load %arg10[%c0_37, %c0_38] : memref<1x128xf32, #tpu.memory_space<vmem>>, vector<1x128xf32>
    %cst_39 = arith.constant dense<0.000000e+00> : vector<8x128xf32>
    %42 = tpu.matmul %39, %40, %cst_39 {dimension_numbers = #tpu.dot_dimension_numbers<[1], [0], [0], [1], [0, 0, 1, 1], [], []>} : vector<8x128xf32>, vector<128x128xf32>, vector<8x128xf32> -> vector<8x128xf32>
    %43 = vector.broadcast %41 : vector<1x128xf32> to vector<8x128xf32>
    %44 = arith.addf %42, %43 : vector<8x128xf32>
    %cst_40 = arith.constant 0.000000e+00 : f32
    %45 = vector.broadcast %cst_40 : f32 to vector<8x128xf32>
    %46 = arith.maximumf %44, %45 : vector<8x128xf32>
    %c0_41 = arith.constant 0 : index
    %c0_42 = arith.constant 0 : index
    %47 = vector.load %arg15[%c0_41, %c0_42] : memref<128x128xf32, #tpu.memory_space<vmem>>, vector<128x128xf32>
    %c0_43 = arith.constant 0 : index
    %c0_44 = arith.constant 0 : index
    %48 = vector.load %arg16[%c0_43, %c0_44] : memref<128x128xf32, #tpu.memory_space<vmem>>, vector<128x128xf32>
    %c0_45 = arith.constant 0 : index
    %c0_46 = arith.constant 0 : index
    %49 = vector.load %arg17[%c0_45, %c0_46] : memref<1x128xf32, #tpu.memory_space<vmem>>, vector<1x128xf32>
    %cst_47 = arith.constant dense<0.000000e+00> : vector<8x128xf32>
    %50 = tpu.matmul %29, %47, %cst_47 {dimension_numbers = #tpu.dot_dimension_numbers<[1], [0], [0], [1], [0, 0, 1, 1], [], []>} : vector<8x128xf32>, vector<128x128xf32>, vector<8x128xf32> -> vector<8x128xf32>
    %cst_48 = arith.constant dense<0.000000e+00> : vector<8x128xf32>
    %51 = tpu.matmul %46, %48, %cst_48 {dimension_numbers = #tpu.dot_dimension_numbers<[1], [0], [0], [1], [0, 0, 1, 1], [], []>} : vector<8x128xf32>, vector<128x128xf32>, vector<8x128xf32> -> vector<8x128xf32>
    %52 = arith.addf %50, %51 : vector<8x128xf32>
    %53 = vector.broadcast %49 : vector<1x128xf32> to vector<8x128xf32>
    %54 = arith.addf %52, %53 : vector<8x128xf32>
    %cst_49 = arith.constant 0.000000e+00 : f32
    %55 = vector.broadcast %cst_49 : f32 to vector<8x128xf32>
    %56 = arith.maximumf %54, %55 : vector<8x128xf32>
    %c0_50 = arith.constant 0 : index
    %c0_51 = arith.constant 0 : index
    %57 = vector.load %arg18[%c0_50, %c0_51] : memref<128x128xf32, #tpu.memory_space<vmem>>, vector<128x128xf32>
    %c0_52 = arith.constant 0 : index
    %c0_53 = arith.constant 0 : index
    %58 = vector.load %arg19[%c0_52, %c0_53] : memref<1x128xf32, #tpu.memory_space<vmem>>, vector<1x128xf32>
    %cst_54 = arith.constant dense<0.000000e+00> : vector<8x128xf32>
    %59 = tpu.matmul %56, %57, %cst_54 {dimension_numbers = #tpu.dot_dimension_numbers<[1], [0], [0], [1], [0, 0, 1, 1], [], []>} : vector<8x128xf32>, vector<128x128xf32>, vector<8x128xf32> -> vector<8x128xf32>
    %60 = vector.broadcast %58 : vector<1x128xf32> to vector<8x128xf32>
    %61 = arith.addf %59, %60 : vector<8x128xf32>
    %cst_55 = arith.constant 0.000000e+00 : f32
    %62 = vector.broadcast %cst_55 : f32 to vector<8x128xf32>
    %63 = arith.maximumf %61, %62 : vector<8x128xf32>
    %c0_56 = arith.constant 0 : index
    %c0_57 = arith.constant 0 : index
    %64 = vector.load %arg20[%c0_56, %c0_57] : memref<8x128xf32, #tpu.memory_space<vmem>>, vector<8x128xf32>
    tpu.vector_store %arg20[%c0_56, %c0_57], %63 {strides = array<i32>} : memref<8x128xf32, #tpu.memory_space<vmem>>, vector<8x128xf32>,
    return
  }
}

</mosaic_0001>

<llo_original>
// kernel: _lambda_.1
$region0: #{_lambda_.1}
  #allocation0 [shape = 'u32[]', space=smem, size = 0x4, offset = 0x4, fixed_abs, tag = 'smem constant byte address 0x4 - core index']
  #allocation1 [shape = 'u32[144,128]{1,0:T(1,128)}', space=vmem, size = 0x12000, scoped, tag = 'internal scratch']
  %s0 = inlined_call_operand.vmem [shape: f32[8,128], index: 0, kind: input, shape index: {}]
  %s1 = inlined_call_operand.vmem [shape: f32[8,128], index: 1, kind: input, shape index: {}]
  %s2 = inlined_call_operand.hbm [shape: f32[128,128], index: 2, kind: input, shape index: {}]
  %s3 = inlined_call_operand.vmem [shape: f32[1,128], index: 3, kind: input, shape index: {}]
  %s4 = inlined_call_operand.hbm [shape: f32[128,128], index: 4, kind: input, shape index: {}]
  %s5 = inlined_call_operand.vmem [shape: f32[1,128], index: 5, kind: input, shape index: {}]
  %s6 = inlined_call_operand.hbm [shape: f32[128,128], index: 6, kind: input, shape index: {}]
  %s7 = inlined_call_operand.hbm [shape: f32[128,128], index: 7, kind: input, shape index: {}]
  %s8 = inlined_call_operand.vmem [shape: f32[1,128], index: 8, kind: input, shape index: {}]
  %s9 = inlined_call_operand.hbm [shape: f32[128,128], index: 9, kind: input, shape index: {}]
  %s10 = inlined_call_operand.vmem [shape: f32[1,128], index: 10, kind: input, shape index: {}]
  %s11 = inlined_call_operand.hbm [shape: f32[128,128], index: 11, kind: input, shape index: {}]
  %s12 = inlined_call_operand.vmem [shape: f32[1,128], index: 12, kind: input, shape index: {}]
  %s13 = inlined_call_operand.hbm [shape: f32[128,128], index: 13, kind: input, shape index: {}]
  %s14 = inlined_call_operand.vmem [shape: f32[1,128], index: 14, kind: input, shape index: {}]
  %s15 = inlined_call_operand.hbm [shape: f32[128,128], index: 15, kind: input, shape index: {}]
  %s16 = inlined_call_operand.hbm [shape: f32[128,128], index: 16, kind: input, shape index: {}]
  %s17 = inlined_call_operand.vmem [shape: f32[1,128], index: 17, kind: input, shape index: {}]
  %s18 = inlined_call_operand.hbm [shape: f32[128,128], index: 18, kind: input, shape index: {}]
  %s19 = inlined_call_operand.vmem [shape: f32[1,128], index: 19, kind: input, shape index: {}]
  %s20 = inlined_call_operand.vmem [shape: f32[8,128], index: 20, kind: output, shape index: {}]
  %s21 = sld [smem:[#allocation0]]
  $region130: #{_lambda_.1} parent=0
    _
  %s23 = ssub.s32 1, %s21
  %s24 = scalar_select 0, %s23, %s21
  $region1: #{_lambda_.1} parent=0
    #allocation2 [shape = 'u8[65536]{0}', space=vmem, size = 0x10000, scoped, tag = 'input window, operand 2, single buffered']
    #allocation3 [shape = 's32[1]{0}', space=sflag, size = 0x4, scoped, tag = 'scoped memory for _lambda_.1']
    #allocation4 [shape = 'u8[65536]{0}', space=vmem, size = 0x10000, scoped, tag = 'input window, operand 4, single buffered']
    #allocation5 [shape = 's32[1]{0}', space=sflag, size = 0x4, scoped, tag = 'scoped memory for _lambda_.1']
    #allocation6 [shape = 'u8[65536]{0}', space=vmem, size = 0x10000, scoped, tag = 'input window, operand 6, single buffered']
    #allocation7 [shape = 'u8[65536]{0}', space=vmem, size = 0x10000, scoped, tag = 'input window, operand 7, single buffered']
    #allocation8 [shape = 's32[1]{0}', space=sflag, size = 0x4, scoped, tag = 'scoped memory for _lambda_.1']
    #allocation9 [shape = 'u8[65536]{0}', space=vmem, size = 0x10000, scoped, tag = 'input window, operand 9, single buffered']
    #allocation10 [shape = 'u8[65536]{0}', space=vmem, size = 0x10000, scoped, tag = 'input window, operand 11, single buffered']
    #allocation11 [shape = 's32[1]{0}', space=sflag, size = 0x4, scoped, tag = 'scoped memory for _lambda_.1']
    #allocation12 [shape = 'u8[65536]{0}', space=vmem, size = 0x10000, scoped, tag = 'input window, operand 13, single buffered']
    #allocation13 [shape = 'u8[65536]{0}', space=vmem, size = 0x10000, scoped, tag = 'input window, operand 15, single buffered']
    #allocation14 [shape = 's32[1]{0}', space=sflag, size = 0x4, scoped, tag = 'scoped memory for _lambda_.1']
    #allocation15 [shape = 'u8[65536]{0}', space=vmem, size = 0x10000, scoped, tag = 'input window, operand 16, single buffered']
    #allocation16 [shape = 'u8[65536]{0}', space=vmem, size = 0x10000, scoped, tag = 'input window, operand 18, single buffered']
    #allocation17 [shape = 's32[1]{0}', space=sflag, size = 0x4, scoped, tag = 'scoped memory for _lambda_.1']
    %25 = vsyncpa [#allocation3], 0
    %26 = vsyncpa [#allocation5], 0
    %27 = vsyncpa [#allocation8], 0
    %28 = vsyncpa [#allocation11], 0
    %29 = vsyncpa [#allocation14], 0
    %30 = vsyncpa [#allocation17], 0
    // Predicated region
    $region2: #{_lambda_.1} parent=1 // pred_check
      _
    $region3: #{_lambda_.1} parent=1 // pred_check_branch
      %32 = sbr.rel (0) target = $region5
    $region4: #{_lambda_.1} parent=1 // pred_region
      _
    $region5: #{_lambda_.1} parent=1 // pred_fallthru
      _
    // Predicated region
    $region6: #{_lambda_.1} parent=1 // pred_check
      _
    $region7: #{_lambda_.1} parent=1 // pred_check_branch
      %34 = sbr.rel (0) target = $region9
    $region8: #{_lambda_.1} parent=1 // pred_region
      _
    $region9: #{_lambda_.1} parent=1 // pred_fallthru
      _
    // Predicated region
    $region10: #{_lambda_.1} parent=1 // pred_check
      _
    $region11: #{_lambda_.1} parent=1 // pred_check_branch
      %36 = sbr.rel (0) target = $region13
    $region12: #{_lambda_.1} parent=1 // pred_region
      %s38 = ssub.s32 2048, 2048
      %39 = vsyncadd [#allocation3], %s38
      %s40 = sshll.u32 [#allocation2], 4
      %s41 = int_to_ptr.vmem [resolvable:$true] %s40
      %46 = dma.hbm_to_vmem [thread:$0]  %s2, 2048, %s41, [#allocation3], 128, 128, 8
    $region13: #{_lambda_.1} parent=1 // pred_fallthru
      _
    // Predicated region
    $region14: #{_lambda_.1} parent=1 // pred_check
      _
    $region15: #{_lambda_.1} parent=1 // pred_check_branch
      %48 = sbr.rel (0) target = $region17
    $region16: #{_lambda_.1} parent=1 // pred_region
      _
    $region17: #{_lambda_.1} parent=1 // pred_fallthru
      _
    // Predicated region
    $region18: #{_lambda_.1} parent=1 // pred_check
      _
    $region19: #{_lambda_.1} parent=1 // pred_check_branch
      %50 = sbr.rel (0) target = $region21
    $region20: #{_lambda_.1} parent=1 // pred_region
      %s52 = ssub.s32 2048, 2048
      %53 = vsyncadd [#allocation5], %s52
      %s54 = sshll.u32 [#allocation4], 4
      %s55 = int_to_ptr.vmem [resolvable:$true] %s54
      %60 = dma.hbm_to_vmem [thread:$0]  %s4, 2048, %s55, [#allocation5], 128, 128, 8
    $region21: #{_lambda_.1} parent=1 // pred_fallthru
      _
    // Predicated region
    $region22: #{_lambda_.1} parent=1 // pred_check
      _
    $region23: #{_lambda_.1} parent=1 // pred_check_branch
      %62 = sbr.rel (0) target = $region25
    $region24: #{_lambda_.1} parent=1 // pred_region
      _
    $region25: #{_lambda_.1} parent=1 // pred_fallthru
      _
    // Predicated region
    $region26: #{_lambda_.1} parent=1 // pred_check
      _
    $region27: #{_lambda_.1} parent=1 // pred_check_branch
      %64 = sbr.rel (0) target = $region29
    $region28: #{_lambda_.1} parent=1 // pred_region
      %s66 = ssub.s32 2048, 2048
      %67 = vsyncadd [#allocation5], %s66
      %s68 = sshll.u32 [#allocation6], 4
      %s69 = int_to_ptr.vmem [resolvable:$true] %s68
      %74 = dma.hbm_to_vmem [thread:$0]  %s6, 2048, %s69, [#allocation5], 128, 128, 8
    $region29: #{_lambda_.1} parent=1 // pred_fallthru
      _
    // Predicated region
    $region30: #{_lambda_.1} parent=1 // pred_check
      _
    $region31: #{_lambda_.1} parent=1 // pred_check_branch
      %76 = sbr.rel (0) target = $region33
    $region32: #{_lambda_.1} parent=1 // pred_region
      %s78 = ssub.s32 2048, 2048
      %79 = vsyncadd [#allocation8], %s78
      %s80 = sshll.u32 [#allocation7], 4
      %s81 = int_to_ptr.vmem [resolvable:$true] %s80
      %86 = dma.hbm_to_vmem [thread:$0]  %s7, 2048, %s81, [#allocation8], 128, 128, 8
    $region33: #{_lambda_.1} parent=1 // pred_fallthru
      _
    // Predicated region
    $region34: #{_lambda_.1} parent=1 // pred_check
      _
    $region35: #{_lambda_.1} parent=1 // pred_check_branch
      %88 = sbr.rel (0) target = $region37
    $region36: #{_lambda_.1} parent=1 // pred_region
      _
    $region37: #{_lambda_.1} parent=1 // pred_fallthru
      _
    // Predicated region
    $region38: #{_lambda_.1} parent=1 // pred_check
      _
    $region39: #{_lambda_.1} parent=1 // pred_check_branch
      %90 = sbr.rel (0) target = $region41
    $region40: #{_lambda_.1} parent=1 // pred_region
      %s92 = ssub.s32 2048, 2048
      %93 = vsyncadd [#allocation8], %s92
      %s94 = sshll.u32 [#allocation9], 4
      %s95 = int_to_ptr.vmem [resolvable:$true] %s94
      %100 = dma.hbm_to_vmem [thread:$0]  %s9, 2048, %s95, [#allocation8], 128, 128, 8
    $region41: #{_lambda_.1} parent=1 // pred_fallthru
      _
    // Predicated region
    $region42: #{_lambda_.1} parent=1 // pred_check
      _
    $region43: #{_lambda_.1} parent=1 // pred_check_branch
      %102 = sbr.rel (0) target = $region45
    $region44: #{_lambda_.1} parent=1 // pred_region
      _
    $region45: #{_lambda_.1} parent=1 // pred_fallthru
      _
    // Predicated region
    $region46: #{_lambda_.1} parent=1 // pred_check
      _
    $region47: #{_lambda_.1} parent=1 // pred_check_branch
      %104 = sbr.rel (0) target = $region49
    $region48: #{_lambda_.1} parent=1 // pred_region
      %s106 = ssub.s32 2048, 2048
      %107 = vsyncadd [#allocation11], %s106
      %s108 = sshll.u32 [#allocation10], 4
      %s109 = int_to_ptr.vmem [resolvable:$true] %s108
      %114 = dma.hbm_to_vmem [thread:$0]  %s11, 2048, %s109, [#allocation11], 128, 128, 8
    $region49: #{_lambda_.1} parent=1 // pred_fallthru
      _
    // Predicated region
    $region50: #{_lambda_.1} parent=1 // pred_check
      _
    $region51: #{_lambda_.1} parent=1 // pred_check_branch
      %116 = sbr.rel (0) target = $region53
    $region52: #{_lambda_.1} parent=1 // pred_region
      _
    $region53: #{_lambda_.1} parent=1 // pred_fallthru
      _
    // Predicated region
    $region54: #{_lambda_.1} parent=1 // pred_check
      _
    $region55: #{_lambda_.1} parent=1 // pred_check_branch
      %118 = sbr.rel (0) target = $region57
    $region56: #{_lambda_.1} parent=1 // pred_region
      %s120 = ssub.s32 2048, 2048
      %121 = vsyncadd [#allocation11], %s120
      %s122 = sshll.u32 [#allocation12], 4
      %s123 = int_to_ptr.vmem [resolvable:$true] %s122
      %128 = dma.hbm_to_vmem [thread:$0]  %s13, 2048, %s123, [#allocation11], 128, 128, 8
    $region57: #{_lambda_.1} parent=1 // pred_fallthru
      _
    // Predicated region
    $region58: #{_lambda_.1} parent=1 // pred_check
      _
    $region59: #{_lambda_.1} parent=1 // pred_check_branch
      %130 = sbr.rel (0) target = $region61
    $region60: #{_lambda_.1} parent=1 // pred_region
      _
    $region61: #{_lambda_.1} parent=1 // pred_fallthru
      _
    // Predicated region
    $region62: #{_lambda_.1} parent=1 // pred_check
      _
    $region63: #{_lambda_.1} parent=1 // pred_check_branch
      %132 = sbr.rel (0) target = $region65
    $region64: #{_lambda_.1} parent=1 // pred_region
      %s134 = ssub.s32 2048, 2048
      %135 = vsyncadd [#allocation14], %s134
      %s136 = sshll.u32 [#allocation13], 4
      %s137 = int_to_ptr.vmem [resolvable:$true] %s136
      %142 = dma.hbm_to_vmem [thread:$0]  %s15, 2048, %s137, [#allocation14], 128, 128, 8
    $region65: #{_lambda_.1} parent=1 // pred_fallthru
      _
    // Predicated region
    $region66: #{_lambda_.1} parent=1 // pred_check
      _
    $region67: #{_lambda_.1} parent=1 // pred_check_branch
      %144 = sbr.rel (0) target = $region69
    $region68: #{_lambda_.1} parent=1 // pred_region
      %s146 = ssub.s32 2048, 2048
      %147 = vsyncadd [#allocation14], %s146
      %s148 = sshll.u32 [#allocation15], 4
      %s149 = int_to_ptr.vmem [resolvable:$true] %s148
      %154 = dma.hbm_to_vmem [thread:$0]  %s16, 2048, %s149, [#allocation14], 128, 128, 8
    $region69: #{_lambda_.1} parent=1 // pred_fallthru
      _
    // Predicated region
    $region70: #{_lambda_.1} parent=1 // pred_check
      _
    $region71: #{_lambda_.1} parent=1 // pred_check_branch
      %156 = sbr.rel (0) target = $region73
    $region72: #{_lambda_.1} parent=1 // pred_region
      _
    $region73: #{_lambda_.1} parent=1 // pred_fallthru
      _
    // Predicated region
    $region74: #{_lambda_.1} parent=1 // pred_check
      _
    $region75: #{_lambda_.1} parent=1 // pred_check_branch
      %158 = sbr.rel (0) target = $region77
    $region76: #{_lambda_.1} parent=1 // pred_region
      %s160 = ssub.s32 2048, 2048
      %161 = vsyncadd [#allocation17], %s160
      %s162 = sshll.u32 [#allocation16], 4
      %s163 = int_to_ptr.vmem [resolvable:$true] %s162
      %168 = dma.hbm_to_vmem [thread:$0]  %s18, 2048, %s163, [#allocation17], 128, 128, 8
    $region77: #{_lambda_.1} parent=1 // pred_fallthru
      _
    // Predicated region
    $region78: #{_lambda_.1} parent=1 // pred_check
      _
    $region79: #{_lambda_.1} parent=1 // pred_check_branch
      %170 = sbr.rel (0) target = $region81
    $region80: #{_lambda_.1} parent=1 // pred_region
      _
    $region81: #{_lambda_.1} parent=1 // pred_fallthru
      _
    // Predicated region
    $region82: #{_lambda_.1} parent=1 // pred_check
      _
    $region83: #{_lambda_.1} parent=1 // pred_check_branch
      %172 = sbr.rel (0) target = $region85
    $region84: #{_lambda_.1} parent=1 // pred_region
      %173 = dma.done [#allocation3], 2048
    $region85: #{_lambda_.1} parent=1 // pred_fallthru
      _
    // Predicated region
    $region86: #{_lambda_.1} parent=1 // pred_check
      _
    $region87: #{_lambda_.1} parent=1 // pred_check_branch
      %175 = sbr.rel (0) target = $region89
    $region88: #{_lambda_.1} parent=1 // pred_region
      %176 = dma.done [#allocation5], 2048
    $region89: #{_lambda_.1} parent=1 // pred_fallthru
      _
    // Predicated region
    $region90: #{_lambda_.1} parent=1 // pred_check
      _
    $region91: #{_lambda_.1} parent=1 // pred_check_branch
      %178 = sbr.rel (0) target = $region93
    $region92: #{_lambda_.1} parent=1 // pred_region
      %179 = dma.done [#allocation5], 2048
    $region93: #{_lambda_.1} parent=1 // pred_fallthru
      _
    // Predicated region
    $region94: #{_lambda_.1} parent=1 // pred_check
      _
    $region95: #{_lambda_.1} parent=1 // pred_check_branch
      %181 = sbr.rel (0) target = $region97
    $region96: #{_lambda_.1} parent=1 // pred_region
      %182 = dma.done [#allocation8], 2048
    $region97: #{_lambda_.1} parent=1 // pred_fallthru
      _
    // Predicated region
    $region98: #{_lambda_.1} parent=1 // pred_check
      _
    $region99: #{_lambda_.1} parent=1 // pred_check_branch
      %184 = sbr.rel (0) target = $region101
    $region100: #{_lambda_.1} parent=1 // pred_region
      %185 = dma.done [#allocation8], 2048
    $region101: #{_lambda_.1} parent=1 // pred_fallthru
      _
    // Predicated region
    $region102: #{_lambda_.1} parent=1 // pred_check
      _
    $region103: #{_lambda_.1} parent=1 // pred_check_branch
      %187 = sbr.rel (0) target = $region105
    $region104: #{_lambda_.1} parent=1 // pred_region
      %188 = dma.done [#allocation11], 2048
    $region105: #{_lambda_.1} parent=1 // pred_fallthru
      _
    // Predicated region
    $region106: #{_lambda_.1} parent=1 // pred_check
      _
    $region107: #{_lambda_.1} parent=1 // pred_check_branch
      %190 = sbr.rel (0) target = $region109
    $region108: #{_lambda_.1} parent=1 // pred_region
      %191 = dma.done [#allocation11], 2048
    $region109: #{_lambda_.1} parent=1 // pred_fallthru
      _
    // Predicated region
    $region110: #{_lambda_.1} parent=1 // pred_check
      _
    $region111: #{_lambda_.1} parent=1 // pred_check_branch
      %193 = sbr.rel (0) target = $region113
    $region112: #{_lambda_.1} parent=1 // pred_region
      %194 = dma.done [#allocation14], 2048
    $region113: #{_lambda_.1} parent=1 // pred_fallthru
      _
    // Predicated region
    $region114: #{_lambda_.1} parent=1 // pred_check
      _
    $region115: #{_lambda_.1} parent=1 // pred_check_branch
      %196 = sbr.rel (0) target = $region117
    $region116: #{_lambda_.1} parent=1 // pred_region
      %197 = dma.done [#allocation14], 2048
    $region117: #{_lambda_.1} parent=1 // pred_fallthru
      _
    // Predicated region
    $region118: #{_lambda_.1} parent=1 // pred_check
      _
    $region119: #{_lambda_.1} parent=1 // pred_check_branch
      %199 = sbr.rel (0) target = $region121
    $region120: #{_lambda_.1} parent=1 // pred_region
      %200 = dma.done [#allocation17], 2048
    $region121: #{_lambda_.1} parent=1 // pred_fallthru
      _
    %v201 = vld [vmem:[%s0] sm:$0xff]
    %v202 = vld [vmem:[%s1] sm:$0xff]
    %v203 = vld [vmem:[#allocation2] sm:$0xff]
    %v204 = vld [vmem:[#allocation2 + $0x8] sm:$0xff]
    %v205 = vld [vmem:[#allocation2 + $0x10] sm:$0xff]
    %v206 = vld [vmem:[#allocation2 + $0x18] sm:$0xff]
    %v207 = vld [vmem:[#allocation2 + $0x20] sm:$0xff]
    %v208 = vld [vmem:[#allocation2 + $0x28] sm:$0xff]
    %v209 = vld [vmem:[#allocation2 + $0x30] sm:$0xff]
    %v210 = vld [vmem:[#allocation2 + $0x38] sm:$0xff]
    %v211 = vld [vmem:[#allocation2 + $0x40] sm:$0xff]
    %v212 = vld [vmem:[#allocation2 + $0x48] sm:$0xff]
    %v213 = vld [vmem:[#allocation2 + $0x50] sm:$0xff]
    %v214 = vld [vmem:[#allocation2 + $0x58] sm:$0xff]
    %v215 = vld [vmem:[#allocation2 + $0x60] sm:$0xff]
    %v216 = vld [vmem:[#allocation2 + $0x68] sm:$0xff]
    %v217 = vld [vmem:[#allocation2 + $0x70] sm:$0xff]
    %v218 = vld [vmem:[#allocation2 + $0x78] sm:$0xff]
    %v219 = vld [vmem:[%s3] sm:$0x1]
    %v221 = vlaneseq
    %v222 = vshrl.u32 %v221, 7
    %v223 = vsub.s32 0, %v222
    %v224 = vrot.slane %v219, %v223
    %226 = vmatprep.subr.mxu0 0.0
    %227 = vmatpush1.msra.mxu0 %v203
    %228 = vmatprep.subr.mxu0 0.0
    %229 = vmatpush1.msra.mxu0 %v204
    %230 = vmatprep.subr.mxu0 0.0
    %231 = vmatpush1.msra.mxu0 %v205
    %232 = vmatprep.subr.mxu0 0.0
    %233 = vmatpush1.msra.mxu0 %v206
    %234 = vmatprep.subr.mxu0 0.0
    %235 = vmatpush1.msra.mxu0 %v207
    %236 = vmatprep.subr.mxu0 0.0
    %237 = vmatpush1.msra.mxu0 %v208
    %238 = vmatprep.subr.mxu0 0.0
    %239 = vmatpush1.msra.mxu0 %v209
    %240 = vmatprep.subr.mxu0 0.0
    %241 = vmatpush1.msra.mxu0 %v210
    %242 = vmatprep.subr.mxu0 0.0
    %243 = vmatpush1.msra.mxu0 %v211
    %244 = vmatprep.subr.mxu0 0.0
    %245 = vmatpush1.msra.mxu0 %v212
    %246 = vmatprep.subr.mxu0 0.0
    %247 = vmatpush1.msra.mxu0 %v213
    %248 = vmatprep.subr.mxu0 0.0
    %249 = vmatpush1.msra.mxu0 %v214
    %250 = vmatprep.subr.mxu0 0.0
    %251 = vmatpush1.msra.mxu0 %v215
    %252 = vmatprep.subr.mxu0 0.0
    %253 = vmatpush1.msra.mxu0 %v216
    %254 = vmatprep.subr.mxu0 0.0
    %255 = vmatpush1.msra.mxu0 %v217
    %256 = vmatprep.subr.mxu0 0.0
    %257 = vmatpush1.msra.mxu0 %v218
    %258 = vmatprep.subr.mxu0 0.0
    %259 = vmatpush1.msra.mxu0 0.0
    %260 = vmatprep.subr.mxu0 0.0
    %261 = vmatpush1.msra.mxu0 0.0
    %262 = vmatprep.subr.mxu0 0.0
    %263 = vmatpush1.msra.mxu0 0.0
    %264 = vmatprep.subr.mxu0 0.0
    %265 = vmatpush1.msra.mxu0 0.0
    %266 = vmatprep.subr.mxu0 0.0
    %267 = vmatpush1.msra.mxu0 0.0
    %268 = vmatprep.subr.mxu0 0.0
    %269 = vmatpush1.msra.mxu0 0.0
    %270 = vmatprep.subr.mxu0 0.0
    %271 = vmatpush1.msra.mxu0 0.0
    %272 = vmatprep.subr.mxu0 0.0
    %273 = vmatpush1.msra.mxu0 0.0
    %274 = vmatprep.subr.mxu0 0.0
    %275 = vmatpush1.msra.mxu0 0.0
    %276 = vmatprep.subr.mxu0 0.0
    %277 = vmatpush1.msra.mxu0 0.0
    %278 = vmatprep.subr.mxu0 0.0
    %279 = vmatpush1.msra.mxu0 0.0
    %280 = vmatprep.subr.mxu0 0.0
    %281 = vmatpush1.msra.mxu0 0.0
    %282 = vmatprep.subr.mxu0 0.0
    %283 = vmatpush1.msra.mxu0 0.0
    %284 = vmatprep.subr.mxu0 0.0
    %285 = vmatpush1.msra.mxu0 0.0
    %286 = vmatprep.subr.mxu0 0.0
    %287 = vmatpush1.msra.mxu0 0.0
    %288 = vmatprep.subr.mxu0 0.0
    %289 = vmatpush1.msra.mxu0 0.0
    %290 = vmatprep.mubr.f32.mxu0 0.0
    %291 = vmatmul.mubr.f32.gmra.mrb[0].mxu0 %v201
    %v292 = vpop.f32.mrb[0].mxu0
    %v293 = vadd.f32 %v224, %v292
    %v294 = vpop.f32.mrb[0].mxu0
    %295 = vdwg.mxu0
    %v296 = vmax.f32 %v293, 0.0
    %v297 = vld [vmem:[#allocation4] sm:$0xff]
    %v298 = vld [vmem:[#allocation4 + $0x8] sm:$0xff]
    %v299 = vld [vmem:[#allocation4 + $0x10] sm:$0xff]
    %v300 = vld [vmem:[#allocation4 + $0x18] sm:$0xff]
    %v301 = vld [vmem:[#allocation4 + $0x20] sm:$0xff]
    %v302 = vld [vmem:[#allocation4 + $0x28] sm:$0xff]
    %v303 = vld [vmem:[#allocation4 + $0x30] sm:$0xff]
    %v304 = vld [vmem:[#allocation4 + $0x38] sm:$0xff]
    %v305 = vld [vmem:[#allocation4 + $0x40] sm:$0xff]
    %v306 = vld [vmem:[#allocation4 + $0x48] sm:$0xff]
    %v307 = vld [vmem:[#allocation4 + $0x50] sm:$0xff]
    %v308 = vld [vmem:[#allocation4 + $0x58] sm:$0xff]
    %v309 = vld [vmem:[#allocation4 + $0x60] sm:$0xff]
    %v310 = vld [vmem:[#allocation4 + $0x68] sm:$0xff]
    %v311 = vld [vmem:[#allocation4 + $0x70] sm:$0xff]
    %v312 = vld [vmem:[#allocation4 + $0x78] sm:$0xff]
    %v313 = vld [vmem:[%s5] sm:$0x1]
    %v315 = vlaneseq
    %v316 = vshrl.u32 %v315, 7
    %v317 = vsub.s32 0, %v316
    %v318 = vrot.slane %v313, %v317
    %320 = vmatprep.subr.mxu0 0.0
    %321 = vmatpush1.msra.mxu0 %v297
    %322 = vmatprep.subr.mxu0 0.0
    %323 = vmatpush1.msra.mxu0 %v298
    %324 = vmatprep.subr.mxu0 0.0
    %325 = vmatpush1.msra.mxu0 %v299
    %326 = vmatprep.subr.mxu0 0.0
    %327 = vmatpush1.msra.mxu0 %v300
    %328 = vmatprep.subr.mxu0 0.0
    %329 = vmatpush1.msra.mxu0 %v301
    %330 = vmatprep.subr.mxu0 0.0
    %331 = vmatpush1.msra.mxu0 %v302
    %332 = vmatprep.subr.mxu0 0.0
    %333 = vmatpush1.msra.mxu0 %v303
    %334 = vmatprep.subr.mxu0 0.0
    %335 = vmatpush1.msra.mxu0 %v304
    %336 = vmatprep.subr.mxu0 0.0
    %337 = vmatpush1.msra.mxu0 %v305
    %338 = vmatprep.subr.mxu0 0.0
    %339 = vmatpush1.msra.mxu0 %v306
    %340 = vmatprep.subr.mxu0 0.0
    %341 = vmatpush1.msra.mxu0 %v307
    %342 = vmatprep.subr.mxu0 0.0
    %343 = vmatpush1.msra.mxu0 %v308
    %344 = vmatprep.subr.mxu0 0.0
    %345 = vmatpush1.msra.mxu0 %v309
    %346 = vmatprep.subr.mxu0 0.0
    %347 = vmatpush1.msra.mxu0 %v310
    %348 = vmatprep.subr.mxu0 0.0
    %349 = vmatpush1.msra.mxu0 %v311
    %350 = vmatprep.subr.mxu0 0.0
    %351 = vmatpush1.msra.mxu0 %v312
    %352 = vmatprep.subr.mxu0 0.0
    %353 = vmatpush1.msra.mxu0 0.0
    %354 = vmatprep.subr.mxu0 0.0
    %355 = vmatpush1.msra.mxu0 0.0
    %356 = vmatprep.subr.mxu0 0.0
    %357 = vmatpush1.msra.mxu0 0.0
    %358 = vmatprep.subr.mxu0 0.0
    %359 = vmatpush1.msra.mxu0 0.0
    %360 = vmatprep.subr.mxu0 0.0
    %361 = vmatpush1.msra.mxu0 0.0
    %362 = vmatprep.subr.mxu0 0.0
    %363 = vmatpush1.msra.mxu0 0.0
    %364 = vmatprep.subr.mxu0 0.0
    %365 = vmatpush1.msra.mxu0 0.0
    %366 = vmatprep.subr.mxu0 0.0
    %367 = vmatpush1.msra.mxu0 0.0
    %368 = vmatprep.subr.mxu0 0.0
    %369 = vmatpush1.msra.mxu0 0.0
    %370 = vmatprep.subr.mxu0 0.0
    %371 = vmatpush1.msra.mxu0 0.0
    %372 = vmatprep.subr.mxu0 0.0
    %373 = vmatpush1.msra.mxu0 0.0
    %374 = vmatprep.subr.mxu0 0.0
    %375 = vmatpush1.msra.mxu0 0.0
    %376 = vmatprep.subr.mxu0 0.0
    %377 = vmatpush1.msra.mxu0 0.0
    %378 = vmatprep.subr.mxu0 0.0
    %379 = vmatpush1.msra.mxu0 0.0
    %380 = vmatprep.subr.mxu0 0.0
    %381 = vmatpush1.msra.mxu0 0.0
    %382 = vmatprep.subr.mxu0 0.0
    %383 = vmatpush1.msra.mxu0 0.0
    %384 = vmatprep.mubr.f32.mxu0 0.0
    %385 = vmatmul.mubr.f32.gmra.mrb[0].mxu0 %v296
    %v386 = vpop.f32.mrb[0].mxu0
    %v387 = vadd.f32 %v318, %v386
    %v388 = vpop.f32.mrb[0].mxu0
    %389 = vdwg.mxu0
    %v390 = vmax.f32 %v387, 0.0
    %v391 = vld [vmem:[#allocation10] sm:$0xff]
    %v392 = vld [vmem:[#allocation10 + $0x8] sm:$0xff]
    %v393 = vld [vmem:[#allocation10 + $0x10] sm:$0xff]
    %v394 = vld [vmem:[#allocation10 + $0x18] sm:$0xff]
    %v395 = vld [vmem:[#allocation10 + $0x20] sm:$0xff]
    %v396 = vld [vmem:[#allocation10 + $0x28] sm:$0xff]
    %v397 = vld [vmem:[#allocation10 + $0x30] sm:$0xff]
    %v398 = vld [vmem:[#allocation10 + $0x38] sm:$0xff]
    %v399 = vld [vmem:[#allocation10 + $0x40] sm:$0xff]
    %v400 = vld [vmem:[#allocation10 + $0x48] sm:$0xff]
    %v401 = vld [vmem:[#allocation10 + $0x50] sm:$0xff]
    %v402 = vld [vmem:[#allocation10 + $0x58] sm:$0xff]
    %v403 = vld [vmem:[#allocation10 + $0x60] sm:$0xff]
    %v404 = vld [vmem:[#allocation10 + $0x68] sm:$0xff]
    %v405 = vld [vmem:[#allocation10 + $0x70] sm:$0xff]
    %v406 = vld [vmem:[#allocation10 + $0x78] sm:$0xff]
    %v407 = vld [vmem:[%s12] sm:$0x1]
    %v409 = vlaneseq
    %v410 = vshrl.u32 %v409, 7
    %v411 = vsub.s32 0, %v410
    %v412 = vrot.slane %v407, %v411
    %414 = vmatprep.subr.mxu0 0.0
    %415 = vmatpush1.msra.mxu0 %v391
    %416 = vmatprep.subr.mxu0 0.0
    %417 = vmatpush1.msra.mxu0 %v392
    %418 = vmatprep.subr.mxu0 0.0
    %419 = vmatpush1.msra.mxu0 %v393
    %420 = vmatprep.subr.mxu0 0.0
    %421 = vmatpush1.msra.mxu0 %v394
    %422 = vmatprep.subr.mxu0 0.0
    %423 = vmatpush1.msra.mxu0 %v395
    %424 = vmatprep.subr.mxu0 0.0
    %425 = vmatpush1.msra.mxu0 %v396
    %426 = vmatprep.subr.mxu0 0.0
    %427 = vmatpush1.msra.mxu0 %v397
    %428 = vmatprep.subr.mxu0 0.0
    %429 = vmatpush1.msra.mxu0 %v398
    %430 = vmatprep.subr.mxu0 0.0
    %431 = vmatpush1.msra.mxu0 %v399
    %432 = vmatprep.subr.mxu0 0.0
    %433 = vmatpush1.msra.mxu0 %v400
    %434 = vmatprep.subr.mxu0 0.0
    %435 = vmatpush1.msra.mxu0 %v401
    %436 = vmatprep.subr.mxu0 0.0
    %437 = vmatpush1.msra.mxu0 %v402
    %438 = vmatprep.subr.mxu0 0.0
    %439 = vmatpush1.msra.mxu0 %v403
    %440 = vmatprep.subr.mxu0 0.0
    %441 = vmatpush1.msra.mxu0 %v404
    %442 = vmatprep.subr.mxu0 0.0
    %443 = vmatpush1.msra.mxu0 %v405
    %444 = vmatprep.subr.mxu0 0.0
    %445 = vmatpush1.msra.mxu0 %v406
    %446 = vmatprep.subr.mxu0 0.0
    %447 = vmatpush1.msra.mxu0 0.0
    %448 = vmatprep.subr.mxu0 0.0
    %449 = vmatpush1.msra.mxu0 0.0
    %450 = vmatprep.subr.mxu0 0.0
    %451 = vmatpush1.msra.mxu0 0.0
    %452 = vmatprep.subr.mxu0 0.0
    %453 = vmatpush1.msra.mxu0 0.0
    %454 = vmatprep.subr.mxu0 0.0
    %455 = vmatpush1.msra.mxu0 0.0
    %456 = vmatprep.subr.mxu0 0.0
    %457 = vmatpush1.msra.mxu0 0.0
    %458 = vmatprep.subr.mxu0 0.0
    %459 = vmatpush1.msra.mxu0 0.0
    %460 = vmatprep.subr.mxu0 0.0
    %461 = vmatpush1.msra.mxu0 0.0
    %462 = vmatprep.subr.mxu0 0.0
    %463 = vmatpush1.msra.mxu0 0.0
    %464 = vmatprep.subr.mxu0 0.0
    %465 = vmatpush1.msra.mxu0 0.0
    %466 = vmatprep.subr.mxu0 0.0
    %467 = vmatpush1.msra.mxu0 0.0
    %468 = vmatprep.subr.mxu0 0.0
    %469 = vmatpush1.msra.mxu0 0.0
    %470 = vmatprep.subr.mxu0 0.0
    %471 = vmatpush1.msra.mxu0 0.0
    %472 = vmatprep.subr.mxu0 0.0
    %473 = vmatpush1.msra.mxu0 0.0
    %474 = vmatprep.subr.mxu0 0.0
    %475 = vmatpush1.msra.mxu0 0.0
    %476 = vmatprep.subr.mxu0 0.0
    %477 = vmatpush1.msra.mxu0 0.0
    %478 = vmatprep.mubr.f32.mxu0 0.0
    %479 = vmatmul.mubr.f32.gmra.mrb[0].mxu0 %v201
    %v480 = vpop.f32.mrb[0].mxu0
    %v481 = vadd.f32 %v412, %v480
    %v482 = vpop.f32.mrb[0].mxu0
    %483 = vdwg.mxu0
    %v484 = vmax.f32 %v481, 0.0
    %v485 = vld [vmem:[#allocation12] sm:$0xff]
    %v486 = vld [vmem:[#allocation12 + $0x8] sm:$0xff]
    %v487 = vld [vmem:[#allocation12 + $0x10] sm:$0xff]
    %v488 = vld [vmem:[#allocation12 + $0x18] sm:$0xff]
    %v489 = vld [vmem:[#allocation12 + $0x20] sm:$0xff]
    %v490 = vld [vmem:[#allocation12 + $0x28] sm:$0xff]
    %v491 = vld [vmem:[#allocation12 + $0x30] sm:$0xff]
    %v492 = vld [vmem:[#allocation12 + $0x38] sm:$0xff]
    %v493 = vld [vmem:[#allocation12 + $0x40] sm:$0xff]
    %v494 = vld [vmem:[#allocation12 + $0x48] sm:$0xff]
    %v495 = vld [vmem:[#allocation12 + $0x50] sm:$0xff]
    %v496 = vld [vmem:[#allocation12 + $0x58] sm:$0xff]
    %v497 = vld [vmem:[#allocation12 + $0x60] sm:$0xff]
    %v498 = vld [vmem:[#allocation12 + $0x68] sm:$0xff]
    %v499 = vld [vmem:[#allocation12 + $0x70] sm:$0xff]
    %v500 = vld [vmem:[#allocation12 + $0x78] sm:$0xff]
    %v501 = vld [vmem:[%s14] sm:$0x1]
    %v503 = vlaneseq
    %v504 = vshrl.u32 %v503, 7
    %v505 = vsub.s32 0, %v504
    %v506 = vrot.slane %v501, %v505
    %508 = vmatprep.subr.mxu0 0.0
    %509 = vmatpush1.msra.mxu0 %v485
    %510 = vmatprep.subr.mxu0 0.0
    %511 = vmatpush1.msra.mxu0 %v486
    %512 = vmatprep.subr.mxu0 0.0
    %513 = vmatpush1.msra.mxu0 %v487
    %514 = vmatprep.subr.mxu0 0.0
    %515 = vmatpush1.msra.mxu0 %v488
    %516 = vmatprep.subr.mxu0 0.0
    %517 = vmatpush1.msra.mxu0 %v489
    %518 = vmatprep.subr.mxu0 0.0
    %519 = vmatpush1.msra.mxu0 %v490
    %520 = vmatprep.subr.mxu0 0.0
    %521 = vmatpush1.msra.mxu0 %v491
    %522 = vmatprep.subr.mxu0 0.0
    %523 = vmatpush1.msra.mxu0 %v492
    %524 = vmatprep.subr.mxu0 0.0
    %525 = vmatpush1.msra.mxu0 %v493
    %526 = vmatprep.subr.mxu0 0.0
    %527 = vmatpush1.msra.mxu0 %v494
    %528 = vmatprep.subr.mxu0 0.0
    %529 = vmatpush1.msra.mxu0 %v495
    %530 = vmatprep.subr.mxu0 0.0
    %531 = vmatpush1.msra.mxu0 %v496
    %532 = vmatprep.subr.mxu0 0.0
    %533 = vmatpush1.msra.mxu0 %v497
    %534 = vmatprep.subr.mxu0 0.0
    %535 = vmatpush1.msra.mxu0 %v498
    %536 = vmatprep.subr.mxu0 0.0
    %537 = vmatpush1.msra.mxu0 %v499
    %538 = vmatprep.subr.mxu0 0.0
    %539 = vmatpush1.msra.mxu0 %v500
    %540 = vmatprep.subr.mxu0 0.0
    %541 = vmatpush1.msra.mxu0 0.0
    %542 = vmatprep.subr.mxu0 0.0
    %543 = vmatpush1.msra.mxu0 0.0
    %544 = vmatprep.subr.mxu0 0.0
    %545 = vmatpush1.msra.mxu0 0.0
    %546 = vmatprep.subr.mxu0 0.0
    %547 = vmatpush1.msra.mxu0 0.0
    %548 = vmatprep.subr.mxu0 0.0
    %549 = vmatpush1.msra.mxu0 0.0
    %550 = vmatprep.subr.mxu0 0.0
    %551 = vmatpush1.msra.mxu0 0.0
    %552 = vmatprep.subr.mxu0 0.0
    %553 = vmatpush1.msra.mxu0 0.0
    %554 = vmatprep.subr.mxu0 0.0
    %555 = vmatpush1.msra.mxu0 0.0
    %556 = vmatprep.subr.mxu0 0.0
    %557 = vmatpush1.msra.mxu0 0.0
    %558 = vmatprep.subr.mxu0 0.0
    %559 = vmatpush1.msra.mxu0 0.0
    %560 = vmatprep.subr.mxu0 0.0
    %561 = vmatpush1.msra.mxu0 0.0
    %562 = vmatprep.subr.mxu0 0.0
    %563 = vmatpush1.msra.mxu0 0.0
    %564 = vmatprep.subr.mxu0 0.0
    %565 = vmatpush1.msra.mxu0 0.0
    %566 = vmatprep.subr.mxu0 0.0
    %567 = vmatpush1.msra.mxu0 0.0
    %568 = vmatprep.subr.mxu0 0.0
    %569 = vmatpush1.msra.mxu0 0.0
    %570 = vmatprep.subr.mxu0 0.0
    %571 = vmatpush1.msra.mxu0 0.0
    %572 = vmatprep.mubr.f32.mxu0 0.0
    %573 = vmatmul.mubr.f32.gmra.mrb[0].mxu0 %v484
    %v574 = vpop.f32.mrb[0].mxu0
    %v575 = vadd.f32 %v506, %v574
    %v576 = vpop.f32.mrb[0].mxu0
    %577 = vdwg.mxu0
    %v578 = vmax.f32 %v575, 0.0
    %v579 = vld [vmem:[#allocation6] sm:$0xff]
    %v580 = vld [vmem:[#allocation6 + $0x8] sm:$0xff]
    %v581 = vld [vmem:[#allocation6 + $0x10] sm:$0xff]
    %v582 = vld [vmem:[#allocation6 + $0x18] sm:$0xff]
    %v583 = vld [vmem:[#allocation6 + $0x20] sm:$0xff]
    %v584 = vld [vmem:[#allocation6 + $0x28] sm:$0xff]
    %v585 = vld [vmem:[#allocation6 + $0x30] sm:$0xff]
    %v586 = vld [vmem:[#allocation6 + $0x38] sm:$0xff]
    %v587 = vld [vmem:[#allocation6 + $0x40] sm:$0xff]
    %v588 = vld [vmem:[#allocation6 + $0x48] sm:$0xff]
    %v589 = vld [vmem:[#allocation6 + $0x50] sm:$0xff]
    %v590 = vld [vmem:[#allocation6 + $0x58] sm:$0xff]
    %v591 = vld [vmem:[#allocation6 + $0x60] sm:$0xff]
    %v592 = vld [vmem:[#allocation6 + $0x68] sm:$0xff]
    %v593 = vld [vmem:[#allocation6 + $0x70] sm:$0xff]
    %v594 = vld [vmem:[#allocation6 + $0x78] sm:$0xff]
    %v595 = vld [vmem:[#allocation7] sm:$0xff]
    %v596 = vld [vmem:[#allocation7 + $0x8] sm:$0xff]
    %v597 = vld [vmem:[#allocation7 + $0x10] sm:$0xff]
    %v598 = vld [vmem:[#allocation7 + $0x18] sm:$0xff]
    %v599 = vld [vmem:[#allocation7 + $0x20] sm:$0xff]
    %v600 = vld [vmem:[#allocation7 + $0x28] sm:$0xff]
    %v601 = vld [vmem:[#allocation7 + $0x30] sm:$0xff]
    %v602 = vld [vmem:[#allocation7 + $0x38] sm:$0xff]
    %v603 = vld [vmem:[#allocation7 + $0x40] sm:$0xff]
    %v604 = vld [vmem:[#allocation7 + $0x48] sm:$0xff]
    %v605 = vld [vmem:[#allocation7 + $0x50] sm:$0xff]
    %v606 = vld [vmem:[#allocation7 + $0x58] sm:$0xff]
    %v607 = vld [vmem:[#allocation7 + $0x60] sm:$0xff]
    %v608 = vld [vmem:[#allocation7 + $0x68] sm:$0xff]
    %v609 = vld [vmem:[#allocation7 + $0x70] sm:$0xff]
    %v610 = vld [vmem:[#allocation7 + $0x78] sm:$0xff]
    %v611 = vld [vmem:[%s8] sm:$0x1]
    %612 = vmatprep.subr.mxu0 0.0
    %613 = vmatpush1.msra.mxu0 %v595
    %614 = vmatprep.subr.mxu0 0.0
    %615 = vmatpush1.msra.mxu0 %v596
    %616 = vmatprep.subr.mxu0 0.0
    %617 = vmatpush1.msra.mxu0 %v597
    %618 = vmatprep.subr.mxu0 0.0
    %619 = vmatpush1.msra.mxu0 %v598
    %620 = vmatprep.subr.mxu0 0.0
    %621 = vmatpush1.msra.mxu0 %v599
    %622 = vmatprep.subr.mxu0 0.0
    %623 = vmatpush1.msra.mxu0 %v600
    %624 = vmatprep.subr.mxu0 0.0
    %625 = vmatpush1.msra.mxu0 %v601
    %626 = vmatprep.subr.mxu0 0.0
    %627 = vmatpush1.msra.mxu0 %v602
    %628 = vmatprep.subr.mxu0 0.0
    %629 = vmatpush1.msra.mxu0 %v603
    %630 = vmatprep.subr.mxu0 0.0
    %631 = vmatpush1.msra.mxu0 %v604
    %632 = vmatprep.subr.mxu0 0.0
    %633 = vmatpush1.msra.mxu0 %v605
    %634 = vmatprep.subr.mxu0 0.0
    %635 = vmatpush1.msra.mxu0 %v606
    %636 = vmatprep.subr.mxu0 0.0
    %637 = vmatpush1.msra.mxu0 %v607
    %638 = vmatprep.subr.mxu0 0.0
    %639 = vmatpush1.msra.mxu0 %v608
    %640 = vmatprep.subr.mxu0 0.0
    %641 = vmatpush1.msra.mxu0 %v609
    %642 = vmatprep.subr.mxu0 0.0
    %643 = vmatpush1.msra.mxu0 %v610
    %644 = vmatprep.subr.mxu0 0.0
    %645 = vmatpush1.msra.mxu0 0.0
    %646 = vmatprep.subr.mxu0 0.0
    %647 = vmatpush1.msra.mxu0 0.0
    %648 = vmatprep.subr.mxu0 0.0
    %649 = vmatpush1.msra.mxu0 0.0
    %650 = vmatprep.subr.mxu0 0.0
    %651 = vmatpush1.msra.mxu0 0.0
    %652 = vmatprep.subr.mxu0 0.0
    %653 = vmatpush1.msra.mxu0 0.0
    %654 = vmatprep.subr.mxu0 0.0
    %655 = vmatpush1.msra.mxu0 0.0
    %656 = vmatprep.subr.mxu0 0.0
    %657 = vmatpush1.msra.mxu0 0.0
    %658 = vmatprep.subr.mxu0 0.0
    %659 = vmatpush1.msra.mxu0 0.0
    %660 = vmatprep.subr.mxu0 0.0
    %661 = vmatpush1.msra.mxu0 0.0
    %662 = vmatprep.subr.mxu0 0.0
    %663 = vmatpush1.msra.mxu0 0.0
    %664 = vmatprep.subr.mxu0 0.0
    %665 = vmatpush1.msra.mxu0 0.0
    %666 = vmatprep.subr.mxu0 0.0
    %667 = vmatpush1.msra.mxu0 0.0
    %668 = vmatprep.subr.mxu0 0.0
    %669 = vmatpush1.msra.mxu0 0.0
    %670 = vmatprep.subr.mxu0 0.0
    %671 = vmatpush1.msra.mxu0 0.0
    %672 = vmatprep.subr.mxu0 0.0
    %673 = vmatpush1.msra.mxu0 0.0
    %674 = vmatprep.subr.mxu0 0.0
    %675 = vmatpush1.msra.mxu0 0.0
    %676 = vmatprep.mubr.f32.mxu0 0.0
    %677 = vmatmul.mubr.f32.gmra.mrb[0].mxu0 %v202
    %v678 = vpop.f32.mrb[0].mxu0
    %v679 = vadd.f32 0.0, %v678
    %v680 = vpop.f32.mrb[0].mxu0
    %681 = vdwg.mxu0
    %682 = vmatprep.subr.mxu0 0.0
    %683 = vmatpush1.msra.mxu0 %v579
    %684 = vmatprep.subr.mxu0 0.0
    %685 = vmatpush1.msra.mxu0 %v580
    %686 = vmatprep.subr.mxu0 0.0
    %687 = vmatpush1.msra.mxu0 %v581
    %688 = vmatprep.subr.mxu0 0.0
    %689 = vmatpush1.msra.mxu0 %v582
    %690 = vmatprep.subr.mxu0 0.0
    %691 = vmatpush1.msra.mxu0 %v583
    %692 = vmatprep.subr.mxu0 0.0
    %693 = vmatpush1.msra.mxu0 %v584
    %694 = vmatprep.subr.mxu0 0.0
    %695 = vmatpush1.msra.mxu0 %v585
    %696 = vmatprep.subr.mxu0 0.0
    %697 = vmatpush1.msra.mxu0 %v586
    %698 = vmatprep.subr.mxu0 0.0
    %699 = vmatpush1.msra.mxu0 %v587
    %700 = vmatprep.subr.mxu0 0.0
    %701 = vmatpush1.msra.mxu0 %v588
    %702 = vmatprep.subr.mxu0 0.0
    %703 = vmatpush1.msra.mxu0 %v589
    %704 = vmatprep.subr.mxu0 0.0
    %705 = vmatpush1.msra.mxu0 %v590
    %706 = vmatprep.subr.mxu0 0.0
    %707 = vmatpush1.msra.mxu0 %v591
    %708 = vmatprep.subr.mxu0 0.0
    %709 = vmatpush1.msra.mxu0 %v592
    %710 = vmatprep.subr.mxu0 0.0
    %711 = vmatpush1.msra.mxu0 %v593
    %712 = vmatprep.subr.mxu0 0.0
    %713 = vmatpush1.msra.mxu0 %v594
    %714 = vmatprep.subr.mxu0 0.0
    %715 = vmatpush1.msra.mxu0 0.0
    %716 = vmatprep.subr.mxu0 0.0
    %717 = vmatpush1.msra.mxu0 0.0
    %718 = vmatprep.subr.mxu0 0.0
    %719 = vmatpush1.msra.mxu0 0.0
    %720 = vmatprep.subr.mxu0 0.0
    %721 = vmatpush1.msra.mxu0 0.0
    %722 = vmatprep.subr.mxu0 0.0
    %723 = vmatpush1.msra.mxu0 0.0
    %724 = vmatprep.subr.mxu0 0.0
    %725 = vmatpush1.msra.mxu0 0.0
    %726 = vmatprep.subr.mxu0 0.0
    %727 = vmatpush1.msra.mxu0 0.0
    %728 = vmatprep.subr.mxu0 0.0
    %729 = vmatpush1.msra.mxu0 0.0
    %730 = vmatprep.subr.mxu0 0.0
    %731 = vmatpush1.msra.mxu0 0.0
    %732 = vmatprep.subr.mxu0 0.0
    %733 = vmatpush1.msra.mxu0 0.0
    %734 = vmatprep.subr.mxu0 0.0
    %735 = vmatpush1.msra.mxu0 0.0
    %736 = vmatprep.subr.mxu0 0.0
    %737 = vmatpush1.msra.mxu0 0.0
    %738 = vmatprep.subr.mxu0 0.0
    %739 = vmatpush1.msra.mxu0 0.0
    %740 = vmatprep.subr.mxu0 0.0
    %741 = vmatpush1.msra.mxu0 0.0
    %742 = vmatprep.subr.mxu0 0.0
    %743 = vmatpush1.msra.mxu0 0.0
    %744 = vmatprep.subr.mxu0 0.0
    %745 = vmatpush1.msra.mxu0 0.0
    %746 = vmatprep.mubr.f32.mxu0 0.0
    %747 = vmatmul.mubr.f32.gmra.mrb[0].mxu0 %v390
    %v748 = vpop.f32.mrb[0].mxu0
    %v749 = vadd.f32 %v679, %v748
    %v750 = vpop.f32.mrb[0].mxu0
    %751 = vdwg.mxu0
    %v753 = vlaneseq
    %v754 = vshrl.u32 %v753, 7
    %v755 = vsub.s32 0, %v754
    %v756 = vrot.slane %v611, %v755
    %v758 = vadd.f32 %v749, %v756
    %v759 = vmax.f32 %v758, 0.0
    %v760 = vld [vmem:[#allocation9] sm:$0xff]
    %v761 = vld [vmem:[#allocation9 + $0x8] sm:$0xff]
    %v762 = vld [vmem:[#allocation9 + $0x10] sm:$0xff]
    %v763 = vld [vmem:[#allocation9 + $0x18] sm:$0xff]
    %v764 = vld [vmem:[#allocation9 + $0x20] sm:$0xff]
    %v765 = vld [vmem:[#allocation9 + $0x28] sm:$0xff]
    %v766 = vld [vmem:[#allocation9 + $0x30] sm:$0xff]
    %v767 = vld [vmem:[#allocation9 + $0x38] sm:$0xff]
    %v768 = vld [vmem:[#allocation9 + $0x40] sm:$0xff]
    %v769 = vld [vmem:[#allocation9 + $0x48] sm:$0xff]
    %v770 = vld [vmem:[#allocation9 + $0x50] sm:$0xff]
    %v771 = vld [vmem:[#allocation9 + $0x58] sm:$0xff]
    %v772 = vld [vmem:[#allocation9 + $0x60] sm:$0xff]
    %v773 = vld [vmem:[#allocation9 + $0x68] sm:$0xff]
    %v774 = vld [vmem:[#allocation9 + $0x70] sm:$0xff]
    %v775 = vld [vmem:[#allocation9 + $0x78] sm:$0xff]
    %v776 = vld [vmem:[%s10] sm:$0x1]
    %v778 = vlaneseq
    %v779 = vshrl.u32 %v778, 7
    %v780 = vsub.s32 0, %v779
    %v781 = vrot.slane %v776, %v780
    %783 = vmatprep.subr.mxu0 0.0
    %784 = vmatpush1.msra.mxu0 %v760
    %785 = vmatprep.subr.mxu0 0.0
    %786 = vmatpush1.msra.mxu0 %v761
    %787 = vmatprep.subr.mxu0 0.0
    %788 = vmatpush1.msra.mxu0 %v762
    %789 = vmatprep.subr.mxu0 0.0
    %790 = vmatpush1.msra.mxu0 %v763
    %791 = vmatprep.subr.mxu0 0.0
    %792 = vmatpush1.msra.mxu0 %v764
    %793 = vmatprep.subr.mxu0 0.0
    %794 = vmatpush1.msra.mxu0 %v765
    %795 = vmatprep.subr.mxu0 0.0
    %796 = vmatpush1.msra.mxu0 %v766
    %797 = vmatprep.subr.mxu0 0.0
    %798 = vmatpush1.msra.mxu0 %v767
    %799 = vmatprep.subr.mxu0 0.0
    %800 = vmatpush1.msra.mxu0 %v768
    %801 = vmatprep.subr.mxu0 0.0
    %802 = vmatpush1.msra.mxu0 %v769
    %803 = vmatprep.subr.mxu0 0.0
    %804 = vmatpush1.msra.mxu0 %v770
    %805 = vmatprep.subr.mxu0 0.0
    %806 = vmatpush1.msra.mxu0 %v771
    %807 = vmatprep.subr.mxu0 0.0
    %808 = vmatpush1.msra.mxu0 %v772
    %809 = vmatprep.subr.mxu0 0.0
    %810 = vmatpush1.msra.mxu0 %v773
    %811 = vmatprep.subr.mxu0 0.0
    %812 = vmatpush1.msra.mxu0 %v774
    %813 = vmatprep.subr.mxu0 0.0
    %814 = vmatpush1.msra.mxu0 %v775
    %815 = vmatprep.subr.mxu0 0.0
    %816 = vmatpush1.msra.mxu0 0.0
    %817 = vmatprep.subr.mxu0 0.0
    %818 = vmatpush1.msra.mxu0 0.0
    %819 = vmatprep.subr.mxu0 0.0
    %820 = vmatpush1.msra.mxu0 0.0
    %821 = vmatprep.subr.mxu0 0.0
    %822 = vmatpush1.msra.mxu0 0.0
    %823 = vmatprep.subr.mxu0 0.0
    %824 = vmatpush1.msra.mxu0 0.0
    %825 = vmatprep.subr.mxu0 0.0
    %826 = vmatpush1.msra.mxu0 0.0
    %827 = vmatprep.subr.mxu0 0.0
    %828 = vmatpush1.msra.mxu0 0.0
    %829 = vmatprep.subr.mxu0 0.0
    %830 = vmatpush1.msra.mxu0 0.0
    %831 = vmatprep.subr.mxu0 0.0
    %832 = vmatpush1.msra.mxu0 0.0
    %833 = vmatprep.subr.mxu0 0.0
    %834 = vmatpush1.msra.mxu0 0.0
    %835 = vmatprep.subr.mxu0 0.0
    %836 = vmatpush1.msra.mxu0 0.0
    %837 = vmatprep.subr.mxu0 0.0
    %838 = vmatpush1.msra.mxu0 0.0
    %839 = vmatprep.subr.mxu0 0.0
    %840 = vmatpush1.msra.mxu0 0.0
    %841 = vmatprep.subr.mxu0 0.0
    %842 = vmatpush1.msra.mxu0 0.0
    %843 = vmatprep.subr.mxu0 0.0
    %844 = vmatpush1.msra.mxu0 0.0
    %845 = vmatprep.subr.mxu0 0.0
    %846 = vmatpush1.msra.mxu0 0.0
    %847 = vmatprep.mubr.f32.mxu0 0.0
    %848 = vmatmul.mubr.f32.gmra.mrb[0].mxu0 %v759
    %v849 = vpop.f32.mrb[0].mxu0
    %v850 = vadd.f32 %v781, %v849
    %v851 = vpop.f32.mrb[0].mxu0
    %852 = vdwg.mxu0
    %v853 = vmax.f32 %v850, 0.0
    %v854 = vld [vmem:[#allocation13] sm:$0xff]
    %v855 = vld [vmem:[#allocation13 + $0x8] sm:$0xff]
    %v856 = vld [vmem:[#allocation13 + $0x10] sm:$0xff]
    %v857 = vld [vmem:[#allocation13 + $0x18] sm:$0xff]
    %v858 = vld [vmem:[#allocation13 + $0x20] sm:$0xff]
    %v859 = vld [vmem:[#allocation13 + $0x28] sm:$0xff]
    %v860 = vld [vmem:[#allocation13 + $0x30] sm:$0xff]
    %v861 = vld [vmem:[#allocation13 + $0x38] sm:$0xff]
    %v862 = vld [vmem:[#allocation13 + $0x40] sm:$0xff]
    %v863 = vld [vmem:[#allocation13 + $0x48] sm:$0xff]
    %v864 = vld [vmem:[#allocation13 + $0x50] sm:$0xff]
    %v865 = vld [vmem:[#allocation13 + $0x58] sm:$0xff]
    %v866 = vld [vmem:[#allocation13 + $0x60] sm:$0xff]
    %v867 = vld [vmem:[#allocation13 + $0x68] sm:$0xff]
    %v868 = vld [vmem:[#allocation13 + $0x70] sm:$0xff]
    %v869 = vld [vmem:[#allocation13 + $0x78] sm:$0xff]
    %v870 = vld [vmem:[#allocation15] sm:$0xff]
    %v871 = vld [vmem:[#allocation15 + $0x8] sm:$0xff]
    %v872 = vld [vmem:[#allocation15 + $0x10] sm:$0xff]
    %v873 = vld [vmem:[#allocation15 + $0x18] sm:$0xff]
    %v874 = vld [vmem:[#allocation15 + $0x20] sm:$0xff]
    %v875 = vld [vmem:[#allocation15 + $0x28] sm:$0xff]
    %v876 = vld [vmem:[#allocation15 + $0x30] sm:$0xff]
    %v877 = vld [vmem:[#allocation15 + $0x38] sm:$0xff]
    %v878 = vld [vmem:[#allocation15 + $0x40] sm:$0xff]
    %v879 = vld [vmem:[#allocation15 + $0x48] sm:$0xff]
    %v880 = vld [vmem:[#allocation15 + $0x50] sm:$0xff]
    %v881 = vld [vmem:[#allocation15 + $0x58] sm:$0xff]
    %v882 = vld [vmem:[#allocation15 + $0x60] sm:$0xff]
    %v883 = vld [vmem:[#allocation15 + $0x68] sm:$0xff]
    %v884 = vld [vmem:[#allocation15 + $0x70] sm:$0xff]
    %v885 = vld [vmem:[#allocation15 + $0x78] sm:$0xff]
    %v886 = vld [vmem:[%s17] sm:$0x1]
    %887 = vmatprep.subr.mxu0 0.0
    %888 = vmatpush1.msra.mxu0 %v870
    %889 = vmatprep.subr.mxu0 0.0
    %890 = vmatpush1.msra.mxu0 %v871
    %891 = vmatprep.subr.mxu0 0.0
    %892 = vmatpush1.msra.mxu0 %v872
    %893 = vmatprep.subr.mxu0 0.0
    %894 = vmatpush1.msra.mxu0 %v873
    %895 = vmatprep.subr.mxu0 0.0
    %896 = vmatpush1.msra.mxu0 %v874
    %897 = vmatprep.subr.mxu0 0.0
    %898 = vmatpush1.msra.mxu0 %v875
    %899 = vmatprep.subr.mxu0 0.0
    %900 = vmatpush1.msra.mxu0 %v876
    %901 = vmatprep.subr.mxu0 0.0
    %902 = vmatpush1.msra.mxu0 %v877
    %903 = vmatprep.subr.mxu0 0.0
    %904 = vmatpush1.msra.mxu0 %v878
    %905 = vmatprep.subr.mxu0 0.0
    %906 = vmatpush1.msra.mxu0 %v879
    %907 = vmatprep.subr.mxu0 0.0
    %908 = vmatpush1.msra.mxu0 %v880
    %909 = vmatprep.subr.mxu0 0.0
    %910 = vmatpush1.msra.mxu0 %v881
    %911 = vmatprep.subr.mxu0 0.0
    %912 = vmatpush1.msra.mxu0 %v882
    %913 = vmatprep.subr.mxu0 0.0
    %914 = vmatpush1.msra.mxu0 %v883
    %915 = vmatprep.subr.mxu0 0.0
    %916 = vmatpush1.msra.mxu0 %v884
    %917 = vmatprep.subr.mxu0 0.0
    %918 = vmatpush1.msra.mxu0 %v885
    %919 = vmatprep.subr.mxu0 0.0
    %920 = vmatpush1.msra.mxu0 0.0
    %921 = vmatprep.subr.mxu0 0.0
    %922 = vmatpush1.msra.mxu0 0.0
    %923 = vmatprep.subr.mxu0 0.0
    %924 = vmatpush1.msra.mxu0 0.0
    %925 = vmatprep.subr.mxu0 0.0
    %926 = vmatpush1.msra.mxu0 0.0
    %927 = vmatprep.subr.mxu0 0.0
    %928 = vmatpush1.msra.mxu0 0.0
    %929 = vmatprep.subr.mxu0 0.0
    %930 = vmatpush1.msra.mxu0 0.0
    %931 = vmatprep.subr.mxu0 0.0
    %932 = vmatpush1.msra.mxu0 0.0
    %933 = vmatprep.subr.mxu0 0.0
    %934 = vmatpush1.msra.mxu0 0.0
    %935 = vmatprep.subr.mxu0 0.0
    %936 = vmatpush1.msra.mxu0 0.0
    %937 = vmatprep.subr.mxu0 0.0
    %938 = vmatpush1.msra.mxu0 0.0
    %939 = vmatprep.subr.mxu0 0.0
    %940 = vmatpush1.msra.mxu0 0.0
    %941 = vmatprep.subr.mxu0 0.0
    %942 = vmatpush1.msra.mxu0 0.0
    %943 = vmatprep.subr.mxu0 0.0
    %944 = vmatpush1.msra.mxu0 0.0
    %945 = vmatprep.subr.mxu0 0.0
    %946 = vmatpush1.msra.mxu0 0.0
    %947 = vmatprep.subr.mxu0 0.0
    %948 = vmatpush1.msra.mxu0 0.0
    %949 = vmatprep.subr.mxu0 0.0
    %950 = vmatpush1.msra.mxu0 0.0
    %951 = vmatprep.mubr.f32.mxu0 0.0
    %952 = vmatmul.mubr.f32.gmra.mrb[0].mxu0 %v853
    %v953 = vpop.f32.mrb[0].mxu0
    %v954 = vadd.f32 0.0, %v953
    %v955 = vpop.f32.mrb[0].mxu0
    %956 = vdwg.mxu0
    %957 = vmatprep.subr.mxu0 0.0
    %958 = vmatpush1.msra.mxu0 %v854
    %959 = vmatprep.subr.mxu0 0.0
    %960 = vmatpush1.msra.mxu0 %v855
    %961 = vmatprep.subr.mxu0 0.0
    %962 = vmatpush1.msra.mxu0 %v856
    %963 = vmatprep.subr.mxu0 0.0
    %964 = vmatpush1.msra.mxu0 %v857
    %965 = vmatprep.subr.mxu0 0.0
    %966 = vmatpush1.msra.mxu0 %v858
    %967 = vmatprep.subr.mxu0 0.0
    %968 = vmatpush1.msra.mxu0 %v859
    %969 = vmatprep.subr.mxu0 0.0
    %970 = vmatpush1.msra.mxu0 %v860
    %971 = vmatprep.subr.mxu0 0.0
    %972 = vmatpush1.msra.mxu0 %v861
    %973 = vmatprep.subr.mxu0 0.0
    %974 = vmatpush1.msra.mxu0 %v862
    %975 = vmatprep.subr.mxu0 0.0
    %976 = vmatpush1.msra.mxu0 %v863
    %977 = vmatprep.subr.mxu0 0.0
    %978 = vmatpush1.msra.mxu0 %v864
    %979 = vmatprep.subr.mxu0 0.0
    %980 = vmatpush1.msra.mxu0 %v865
    %981 = vmatprep.subr.mxu0 0.0
    %982 = vmatpush1.msra.mxu0 %v866
    %983 = vmatprep.subr.mxu0 0.0
    %984 = vmatpush1.msra.mxu0 %v867
    %985 = vmatprep.subr.mxu0 0.0
    %986 = vmatpush1.msra.mxu0 %v868
    %987 = vmatprep.subr.mxu0 0.0
    %988 = vmatpush1.msra.mxu0 %v869
    %989 = vmatprep.subr.mxu0 0.0
    %990 = vmatpush1.msra.mxu0 0.0
    %991 = vmatprep.subr.mxu0 0.0
    %992 = vmatpush1.msra.mxu0 0.0
    %993 = vmatprep.subr.mxu0 0.0
    %994 = vmatpush1.msra.mxu0 0.0
    %995 = vmatprep.subr.mxu0 0.0
    %996 = vmatpush1.msra.mxu0 0.0
    %997 = vmatprep.subr.mxu0 0.0
    %998 = vmatpush1.msra.mxu0 0.0
    %999 = vmatprep.subr.mxu0 0.0
    %1000 = vmatpush1.msra.mxu0 0.0
    %1001 = vmatprep.subr.mxu0 0.0
    %1002 = vmatpush1.msra.mxu0 0.0
    %1003 = vmatprep.subr.mxu0 0.0
    %1004 = vmatpush1.msra.mxu0 0.0
    %1005 = vmatprep.subr.mxu0 0.0
    %1006 = vmatpush1.msra.mxu0 0.0
    %1007 = vmatprep.subr.mxu0 0.0
    %1008 = vmatpush1.msra.mxu0 0.0
    %1009 = vmatprep.subr.mxu0 0.0
    %1010 = vmatpush1.msra.mxu0 0.0
    %1011 = vmatprep.subr.mxu0 0.0
    %1012 = vmatpush1.msra.mxu0 0.0
    %1013 = vmatprep.subr.mxu0 0.0
    %1014 = vmatpush1.msra.mxu0 0.0
    %1015 = vmatprep.subr.mxu0 0.0
    %1016 = vmatpush1.msra.mxu0 0.0
    %1017 = vmatprep.subr.mxu0 0.0
    %1018 = vmatpush1.msra.mxu0 0.0
    %1019 = vmatprep.subr.mxu0 0.0
    %1020 = vmatpush1.msra.mxu0 0.0
    %1021 = vmatprep.mubr.f32.mxu0 0.0
    %1022 = vmatmul.mubr.f32.gmra.mrb[0].mxu0 %v578
    %v1023 = vpop.f32.mrb[0].mxu0
    %v1024 = vadd.f32 %v954, %v1023
    %v1025 = vpop.f32.mrb[0].mxu0
    %1026 = vdwg.mxu0
    %v1028 = vlaneseq
    %v1029 = vshrl.u32 %v1028, 7
    %v1030 = vsub.s32 0, %v1029
    %v1031 = vrot.slane %v886, %v1030
    %v1033 = vadd.f32 %v1024, %v1031
    %v1034 = vmax.f32 %v1033, 0.0
    %v1035 = vld [vmem:[#allocation16] sm:$0xff]
    %v1036 = vld [vmem:[#allocation16 + $0x8] sm:$0xff]
    %v1037 = vld [vmem:[#allocation16 + $0x10] sm:$0xff]
    %v1038 = vld [vmem:[#allocation16 + $0x18] sm:$0xff]
    %v1039 = vld [vmem:[#allocation16 + $0x20] sm:$0xff]
    %v1040 = vld [vmem:[#allocation16 + $0x28] sm:$0xff]
    %v1041 = vld [vmem:[#allocation16 + $0x30] sm:$0xff]
    %v1042 = vld [vmem:[#allocation16 + $0x38] sm:$0xff]
    %v1043 = vld [vmem:[#allocation16 + $0x40] sm:$0xff]
    %v1044 = vld [vmem:[#allocation16 + $0x48] sm:$0xff]
    %v1045 = vld [vmem:[#allocation16 + $0x50] sm:$0xff]
    %v1046 = vld [vmem:[#allocation16 + $0x58] sm:$0xff]
    %v1047 = vld [vmem:[#allocation16 + $0x60] sm:$0xff]
    %v1048 = vld [vmem:[#allocation16 + $0x68] sm:$0xff]
    %v1049 = vld [vmem:[#allocation16 + $0x70] sm:$0xff]
    %v1050 = vld [vmem:[#allocation16 + $0x78] sm:$0xff]
    %v1051 = vld [vmem:[%s19] sm:$0x1]
    %v1053 = vlaneseq
    %v1054 = vshrl.u32 %v1053, 7
    %v1055 = vsub.s32 0, %v1054
    %v1056 = vrot.slane %v1051, %v1055
    %1058 = vmatprep.subr.mxu0 0.0
    %1059 = vmatpush1.msra.mxu0 %v1035
    %1060 = vmatprep.subr.mxu0 0.0
    %1061 = vmatpush1.msra.mxu0 %v1036
    %1062 = vmatprep.subr.mxu0 0.0
    %1063 = vmatpush1.msra.mxu0 %v1037
    %1064 = vmatprep.subr.mxu0 0.0
    %1065 = vmatpush1.msra.mxu0 %v1038
    %1066 = vmatprep.subr.mxu0 0.0
    %1067 = vmatpush1.msra.mxu0 %v1039
    %1068 = vmatprep.subr.mxu0 0.0
    %1069 = vmatpush1.msra.mxu0 %v1040
    %1070 = vmatprep.subr.mxu0 0.0
    %1071 = vmatpush1.msra.mxu0 %v1041
    %1072 = vmatprep.subr.mxu0 0.0
    %1073 = vmatpush1.msra.mxu0 %v1042
    %1074 = vmatprep.subr.mxu0 0.0
    %1075 = vmatpush1.msra.mxu0 %v1043
    %1076 = vmatprep.subr.mxu0 0.0
    %1077 = vmatpush1.msra.mxu0 %v1044
    %1078 = vmatprep.subr.mxu0 0.0
    %1079 = vmatpush1.msra.mxu0 %v1045
    %1080 = vmatprep.subr.mxu0 0.0
    %1081 = vmatpush1.msra.mxu0 %v1046
    %1082 = vmatprep.subr.mxu0 0.0
    %1083 = vmatpush1.msra.mxu0 %v1047
    %1084 = vmatprep.subr.mxu0 0.0
    %1085 = vmatpush1.msra.mxu0 %v1048
    %1086 = vmatprep.subr.mxu0 0.0
    %1087 = vmatpush1.msra.mxu0 %v1049
    %1088 = vmatprep.subr.mxu0 0.0
    %1089 = vmatpush1.msra.mxu0 %v1050
    %1090 = vmatprep.subr.mxu0 0.0
    %1091 = vmatpush1.msra.mxu0 0.0
    %1092 = vmatprep.subr.mxu0 0.0
    %1093 = vmatpush1.msra.mxu0 0.0
    %1094 = vmatprep.subr.mxu0 0.0
    %1095 = vmatpush1.msra.mxu0 0.0
    %1096 = vmatprep.subr.mxu0 0.0
    %1097 = vmatpush1.msra.mxu0 0.0
    %1098 = vmatprep.subr.mxu0 0.0
    %1099 = vmatpush1.msra.mxu0 0.0
    %1100 = vmatprep.subr.mxu0 0.0
    %1101 = vmatpush1.msra.mxu0 0.0
    %1102 = vmatprep.subr.mxu0 0.0
    %1103 = vmatpush1.msra.mxu0 0.0
    %1104 = vmatprep.subr.mxu0 0.0
    %1105 = vmatpush1.msra.mxu0 0.0
    %1106 = vmatprep.subr.mxu0 0.0
    %1107 = vmatpush1.msra.mxu0 0.0
    %1108 = vmatprep.subr.mxu0 0.0
    %1109 = vmatpush1.msra.mxu0 0.0
    %1110 = vmatprep.subr.mxu0 0.0
    %1111 = vmatpush1.msra.mxu0 0.0
    %1112 = vmatprep.subr.mxu0 0.0
    %1113 = vmatpush1.msra.mxu0 0.0
    %1114 = vmatprep.subr.mxu0 0.0
    %1115 = vmatpush1.msra.mxu0 0.0
    %1116 = vmatprep.subr.mxu0 0.0
    %1117 = vmatpush1.msra.mxu0 0.0
    %1118 = vmatprep.subr.mxu0 0.0
    %1119 = vmatpush1.msra.mxu0 0.0
    %1120 = vmatprep.subr.mxu0 0.0
    %1121 = vmatpush1.msra.mxu0 0.0
    %1122 = vmatprep.mubr.f32.mxu0 0.0
    %1123 = vmatmul.mubr.f32.gmra.mrb[0].mxu0 %v1034
    %v1124 = vpop.f32.mrb[0].mxu0
    %v1125 = vadd.f32 %v1056, %v1124
    %v1126 = vpop.f32.mrb[0].mxu0
    %1127 = vdwg.mxu0
    %v1128 = vmax.f32 %v1125, 0.0
    %1129 = vst [vmem:[%s20] sm:$0xff] %v1128
    // Predicated region
    $region122: #{_lambda_.1} parent=1 // pred_check
      _
    $region123: #{_lambda_.1} parent=1 // pred_check_branch
      %1131 = sbr.rel (0) target = $region125
    $region124: #{_lambda_.1} parent=1 // pred_region
      _
    $region125: #{_lambda_.1} parent=1 // pred_fallthru
      _
    // Predicated region
    $region126: #{_lambda_.1} parent=1 // pred_check
      _
    $region127: #{_lambda_.1} parent=1 // pred_check_branch
      %1133 = sbr.rel (0) target = $region129
    $region128: #{_lambda_.1} parent=1 // pred_region
      _
    $region129: #{_lambda_.1} parent=1 // pred_fallthru
      _
    %1134 = vsyncpa [#allocation3], 1
    %1135 = vsyncpa [#allocation5], 1
    %1136 = vsyncpa [#allocation8], 1
    %1137 = vsyncpa [#allocation11], 1
    %1138 = vsyncpa [#allocation14], 1
    %1139 = vsyncpa [#allocation17], 1

</llo_original>
